<compile_context>
chip_gen: v5e
topology: v5e:2x2
jax: 0.10.0
libtpu: 0.0.40
codegen_flags: <defaults>
</compile_context>

<pallas_src>
import math
import random
from collections import defaultdict

import numpy as np
import jax
import jax.numpy as jnp
from jax.experimental import pallas as pl
from jax.experimental.pallas import tpu as pltpu


# ---------------------------------------------------------------------------
# Host-side table construction (vectorized numpy, O(H*W)).
# skimage semantics reproduced:
#   AffineTransform(shear=a).params = [[1, -sin a, 0], [0, cos a, 0], [0, 0, 1]]
#   warp() uses it as the inverse map:  x_in = col - sin(a)*row, y_in = cos(a)*row
#   order=1 (bilinear), mode='reflect' (numpy.pad 'reflect': mirror, no edge
#   repeat), preserve_range=True.  clip=True is a no-op for convex weights.
# ---------------------------------------------------------------------------
def _mirror_index(idx, n):
    """numpy.pad 'reflect' index folding (vectorized, handles negatives)."""
    idx = np.asarray(idx)
    if n == 1:
        return np.zeros_like(idx)
    period = 2 * (n - 1)
    idx = np.mod(idx, period)
    return np.where(idx >= n, period - idx, idx)


def build_shear_tables(h, w, angle):
    """Separable resampling tables for the shear warp.

    Returns:
      y0, y1 : (H,) int32   source-row indices of the two vertical taps
      wy0    : (H,) float32 weight of the y0 tap (y1 tap weight = 1 - wy0)
      hx     : (H, W, W) float32 per-output-row horizontal resample matrices
               (hx[r, x_src, x_out]; at most 2 nonzeros per output column)
    """
    sin_a, cos_a = math.sin(angle), math.cos(angle)
    rows = np.arange(h)
    cols = np.arange(w)

    # vertical: y_in = cos(a) * row
    y_in = cos_a * rows
    yf = np.floor(y_in)
    fy = (y_in - yf).astype(np.float32)
    y0 = _mirror_index(yf.astype(np.int64), h).astype(np.int32)
    y1 = _mirror_index(yf.astype(np.int64) + 1, h).astype(np.int32)
    wy0 = (1.0 - fy).astype(np.float32)

    # horizontal: x_in = col - sin(a) * row  (constant fractional shift per row)
    x_in = cols[None, :] - sin_a * rows[:, None]
    xf = np.floor(x_in)
    fx = (x_in - xf).astype(np.float32)
    x0 = _mirror_index(xf.astype(np.int64), w)
    x1 = _mirror_index(xf.astype(np.int64) + 1, w)

    hx = np.zeros((h, w, w), dtype=np.float32)  # [row, x_src, x_out]
    r_idx = np.repeat(rows, w)
    c_idx = np.tile(cols, h)
    np.add.at(hx, (r_idx, x0.ravel(), c_idx), (1.0 - fx).ravel())
    np.add.at(hx, (r_idx, x1.ravel(), c_idx), fx.ravel())
    return y0, y1, wy0, hx


# ---------------------------------------------------------------------------
# Pallas kernel: vertical 2-tap blend (VPU) + per-row horizontal resample
# as a batched MXU matmul, in (row, channel, width) layout.
# ---------------------------------------------------------------------------
def _shear_rows_kernel(img_a_ref, img_b_ref, wy_ref, hx_ref, out_ref):
    # img_a/img_b: (TR, C_pad, W) f32  -- source rows y0[r] / y1[r] per out row
    # wy:          (TR, W)        f32  -- weight of the y0 tap
    # hx:          (TR, W, W)     bf16 -- per-output-row horizontal resample
    # out:         (TR, C_pad, W) f32
    wy = wy_ref[...][:, None, :]                                   # (TR, 1, W)
    blended = img_a_ref[...] * wy + img_b_ref[...] * (1.0 - wy)    # VPU
    out_ref[...] = jax.lax.dot_general(                            # MXU, batched
        blended.astype(hx_ref.dtype), hx_ref[...],
        dimension_numbers=(((2,), (1,)), ((0,), (0,))),            # tcw,twx->tcx
        preferred_element_type=jnp.float32)


def _pick_row_block(h, w, hx_elt_bytes=2, budget_bytes=4 << 20):
    """Output rows per grid step; keeps each (tr, W, W) Hx buffer <= budget."""
    max_tr = max(8, budget_bytes // max(1, w * w * hx_elt_bytes))
    if h <= max_tr:
        return h
    cand = (min(h - 1, max_tr) // 8) * 8
    while cand >= 8:
        if h % cand == 0:
            return cand
        cand -= 8
    return h  # no 8-aligned divisor of H: fall back to a single block


def shear_images(imgs, angle, *, row_block=None):
    """imgs: (C, H, W) array -> sheared (C, H, W) float32 via a Pallas TPU kernel."""
    c, h, w = imgs.shape
    c_pad = max(8, -(-c // 8) * 8)  # pad channels to a sublane multiple

    y0, y1, wy0, hx = build_shear_tables(h, w, angle)

    imgs_f = jnp.asarray(imgs, dtype=jnp.float32)
    if c_pad != c:
        imgs_f = jnp.pad(imgs_f, ((0, c_pad - c), (0, 0), (0, 0)))
    img_t = jnp.transpose(imgs_f, (1, 0, 2))                  # (H, C_pad, W)
    img_a = img_t[jnp.asarray(y0, dtype=jnp.int32)]           # (H, C_pad, W)
    img_b = img_t[jnp.asarray(y1, dtype=jnp.int32)]           # (H, C_pad, W)
    wy = jnp.asarray(np.repeat(wy0[:, None], w, axis=1))      # (H, W) f32
    hx_b = jnp.asarray(hx, dtype=jnp.bfloat16)                # (H, W, W) bf16

    tr = row_block if row_block is not None else _pick_row_block(h, w)
    if h % tr != 0 or (tr % 8 != 0 and tr != h):
        tr = h
    grid = (h // tr,)

    flops = 2 * h * c_pad * w * w + 3 * h * c_pad * w
    bytes_accessed = (h * w * w * 2            # Hx (bf16), dominant stream
                      + 2 * h * c_pad * w * 4  # the two gathered source images
                      + h * w * 4              # wy
                      + h * c_pad * w * 4)     # output

    out_t = pl.pallas_call(
        _shear_rows_kernel,
        out_shape=jax.ShapeDtypeStruct((h, c_pad, w), jnp.float32),
        grid_spec=pltpu.PrefetchScalarGridSpec(
            num_scalar_prefetch=0,
            grid=grid,
            in_specs=[
                pl.BlockSpec((tr, c_pad, w), lambda i: (i, 0, 0)),  # img_a
                pl.BlockSpec((tr, c_pad, w), lambda i: (i, 0, 0)),  # img_b
                pl.BlockSpec((tr, w), lambda i: (i, 0)),            # wy
                pl.BlockSpec((tr, w, w), lambda i: (i, 0, 0)),      # hx
            ],
            out_specs=pl.BlockSpec((tr, c_pad, w), lambda i: (i, 0, 0)),
        ),
        compiler_params=pltpu.CompilerParams(
            dimension_semantics=("parallel",),
            vmem_limit_bytes=48 * 1024 * 1024,
        ),
        cost_estimate=pl.CostEstimate(
            flops=flops, transcendentals=0, bytes_accessed=bytes_accessed),
    )(img_a, img_b, wy, hx_b)

    return jnp.transpose(out_t, (1, 0, 2))[:c]                # back to (C, H, W)


# ---------------------------------------------------------------------------
# Module-equivalent wrapper.
# ---------------------------------------------------------------------------
class RandomShear:
    """Pallas-backed equivalent of the PyTorch RandomShear dict transform."""

    def __init__(self, p=0.5, shear=20):
        self.p = p
        if not isinstance(shear, tuple):
            shear = (-shear, shear)
        self.shear = [math.radians(x) for x in shear]

    def __call__(self, x, rng=None):
        rng = rng if rng is not None else random
        angle = self.shear[0] + (self.shear[1] - self.shear[0]) * rng.random()
        apply = rng.uniform(0.0, 1.0) < self.p

        out = dict(x)
        if not apply:
            return out

        # Group every CHW array by (H, W) and warp each group with a single
        # pallas_call (channels of all dict entries concatenated -> wide MXU M).
        groups = defaultdict(list)
        for k, v in x.items():
            if isinstance(v, (jax.Array, np.ndarray)) and getattr(v, "ndim", 0) == 3:
                groups[tuple(v.shape[1:])].append(k)
            # TODO(synk): non-3D tensors are passed through unchanged (the torch
            # module would hand them to skimage and fail on such inputs anyway).
        for (h, w), keys in groups.items():
            imgs = [jnp.asarray(x[k], dtype=jnp.float32) for k in keys]
            warped = shear_images(jnp.concatenate(imgs, axis=0), angle)
            off = 0
            for k, im in zip(keys, imgs):
                ck = im.shape[0]
                out[k] = warped[off:off + ck]
                off += ck
        return out


# ---------------------------------------------------------------------------
# Independent float32 per-pixel reference of the skimage warp (test only).
# ---------------------------------------------------------------------------
def _mirror_scalar(t, n):
    if n == 1:
        return 0
    period = 2 * (n - 1)
    t = t % period
    return period - t if t >= n else t


def warp_shear_reference(img_chw, angle):
    img = np.asarray(img_chw, dtype=np.float32)
    c, h, w = img.shape
    sin_a, cos_a = math.sin(angle), math.cos(angle)
    out = np.zeros_like(img)
    for r in range(h):
        y_in = cos_a * r
        yb = math.floor(y_in)
        fy = y_in - yb
        ya, yc = _mirror_scalar(yb, h), _mirror_scalar(yb + 1, h)
        for col in range(w):
            x_in = col - sin_a * r
            xb = math.floor(x_in)
            fx = x_in - xb
            xa, xc = _mirror_scalar(xb, w), _mirror_scalar(xb + 1, w)
            out[:, r, col] = ((1 - fy) * (1 - fx) * img[:, ya, xa]
                              + (1 - fy) * fx * img[:, ya, xc]
                              + fy * (1 - fx) * img[:, yc, xa]
                              + fy * fx * img[:, yc, xc])
    return out


if __name__ == "__main__":
    key = jax.random.PRNGKey(0)
    k_img, k_depth = jax.random.split(key)
    img = jax.random.uniform(k_img, (4, 16, 16), dtype=jnp.float32)
    depth = jax.random.uniform(k_depth, (2, 16, 16), dtype=jnp.float32)
    batch = {"image": img, "depth": depth, "label": 3}

    # p=1.0 so the Pallas kernel is guaranteed to run in this demo
    # (module default is p=0.5; the wrapper supports any p).
    rs = RandomShear(p=1.0, shear=20)
    out = rs(batch, rng=random.Random(0))
    out_img = jax.block_until_ready(out["image"])
    out_depth = jax.block_until_ready(out["depth"])
    assert out_img.shape == (4, 16, 16)
    assert out_depth.shape == (2, 16, 16)
    assert out["label"] == 3

    # Recover the angle the module drew (same rng stream as above).
    angle = rs.shear[0] + (rs.shear[1] - rs.shear[0]) * random.Random(0).random()

    # Check against an independent per-pixel float32 warp reference
    # (tolerance loosened for the bf16 resample weights / MXU inputs).
    ref_img = warp_shear_reference(np.asarray(img), angle)
    ref_depth = warp_shear_reference(np.asarray(depth), angle)
    np.testing.assert_allclose(np.asarray(out_img), ref_img, rtol=2e-2, atol=2e-2)
    np.testing.assert_allclose(np.asarray(out_depth), ref_depth, rtol=2e-2, atol=2e-2)

    # Also exercise the multi-step (pipelined, grid > 1) path explicitly.
    warped2 = jax.block_until_ready(
        shear_images(jnp.concatenate([img, depth], axis=0), angle, row_block=8))
    ref_all = np.concatenate([ref_img, ref_depth], axis=0)
    np.testing.assert_allclose(np.asarray(warped2), ref_all, rtol=2e-2, atol=2e-2)

    print("KERNEL_OK")
</pallas_src>

<mosaic_0001>
module attributes {stable_mosaic.version = 11 : i64} {
  func.func @_shear_rows_kernel(%arg0: i32, %arg1: memref<16x8x16xf32, #tpu.memory_space<vmem>>, %arg2: memref<16x8x16xf32, #tpu.memory_space<vmem>>, %arg3: memref<16x16xf32, #tpu.memory_space<vmem>>, %arg4: memref<16x16x16xbf16, #tpu.memory_space<vmem>>, %arg5: memref<16x8x16xf32, #tpu.memory_space<vmem>>) attributes {dimension_semantics = [#tpu.dimension_semantics<parallel>], iteration_bounds = array<i64: 1>, scalar_prefetch = 0 : i64, scratch_operands = 0 : i64, tpu.core_type = #tpu.core_type<tc>, window_params = [{transform_indices = @transform_0, window_bounds = array<i64: 16, 8, 16>}, {transform_indices = @transform_1, window_bounds = array<i64: 16, 8, 16>}, {transform_indices = @transform_2, window_bounds = array<i64: 16, 16>}, {transform_indices = @transform_3, window_bounds = array<i64: 16, 16, 16>}, {transform_indices = @transform_4, window_bounds = array<i64: 16, 8, 16>}]} {
    %c0 = arith.constant 0 : index
    %c0_0 = arith.constant 0 : index
    %0 = vector.load %arg3[%c0, %c0_0] : memref<16x16xf32, #tpu.memory_space<vmem>>, vector<16x16xf32>
    %1 = vector.shape_cast %0 : vector<16x16xf32> to vector<16x1x16xf32>
    %c0_1 = arith.constant 0 : index
    %c0_2 = arith.constant 0 : index
    %c0_3 = arith.constant 0 : index
    %2 = vector.load %arg1[%c0_1, %c0_2, %c0_3] : memref<16x8x16xf32, #tpu.memory_space<vmem>>, vector<16x8x16xf32>
    %3 = vector.broadcast %1 : vector<16x1x16xf32> to vector<16x8x16xf32>
    %4 = arith.mulf %2, %3 : vector<16x8x16xf32>
    %c0_4 = arith.constant 0 : index
    %c0_5 = arith.constant 0 : index
    %c0_6 = arith.constant 0 : index
    %5 = vector.load %arg2[%c0_4, %c0_5, %c0_6] : memref<16x8x16xf32, #tpu.memory_space<vmem>>, vector<16x8x16xf32>
    %cst = arith.constant 1.000000e+00 : f32
    %6 = vector.broadcast %cst : f32 to vector<16x1x16xf32>
    %7 = arith.subf %6, %1 : vector<16x1x16xf32>
    %8 = vector.broadcast %7 : vector<16x1x16xf32> to vector<16x8x16xf32>
    %9 = arith.mulf %5, %8 : vector<16x8x16xf32>
    %10 = arith.addf %4, %9 : vector<16x8x16xf32>
    %11 = arith.truncf %10 : vector<16x8x16xf32> to vector<16x8x16xbf16>
    %c0_7 = arith.constant 0 : index
    %c0_8 = arith.constant 0 : index
    %c0_9 = arith.constant 0 : index
    %12 = vector.load %arg4[%c0_7, %c0_8, %c0_9] : memref<16x16x16xbf16, #tpu.memory_space<vmem>>, vector<16x16x16xbf16>
    %cst_10 = arith.constant dense<0.000000e+00> : vector<16x8x16xf32>
    %13 = tpu.matmul %11, %12, %cst_10 {dimension_numbers = #tpu.dot_dimension_numbers<[2], [1], [1], [2], [0, 0, 0, 1, 1, 2], [0], [0]>} : vector<16x8x16xbf16>, vector<16x16x16xbf16>, vector<16x8x16xf32> -> vector<16x8x16xf32>
    %c0_11 = arith.constant 0 : index
    %c0_12 = arith.constant 0 : index
    %c0_13 = arith.constant 0 : index
    %14 = vector.load %arg5[%c0_11, %c0_12, %c0_13] : memref<16x8x16xf32, #tpu.memory_space<vmem>>, vector<16x8x16xf32>
    tpu.vector_store %arg5[%c0_11, %c0_12, %c0_13], %13 {strides = array<i32>} : memref<16x8x16xf32, #tpu.memory_space<vmem>>, vector<16x8x16xf32>,
    return
  }
  func.func @transform_0(%arg0: i32) -> (i32, i32, i32) {
    %c0_i32 = arith.constant 0 : i32
    %c0_i32_0 = arith.constant 0 : i32
    %c0_i32_1 = arith.constant 0 : i32
    return %arg0, %c0_i32, %c0_i32_0 : i32, i32, i32
  }
  func.func @transform_1(%arg0: i32) -> (i32, i32, i32) {
    %c0_i32 = arith.constant 0 : i32
    %c0_i32_0 = arith.constant 0 : i32
    %c0_i32_1 = arith.constant 0 : i32
    return %arg0, %c0_i32, %c0_i32_0 : i32, i32, i32
  }
  func.func @transform_2(%arg0: i32) -> (i32, i32) {
    %c0_i32 = arith.constant 0 : i32
    %c0_i32_0 = arith.constant 0 : i32
    return %arg0, %c0_i32 : i32, i32
  }
  func.func @transform_3(%arg0: i32) -> (i32, i32, i32) {
    %c0_i32 = arith.constant 0 : i32
    %c0_i32_0 = arith.constant 0 : i32
    %c0_i32_1 = arith.constant 0 : i32
    return %arg0, %c0_i32, %c0_i32_0 : i32, i32, i32
  }
  func.func @transform_4(%arg0: i32) -> (i32, i32, i32) {
    %c0_i32 = arith.constant 0 : i32
    %c0_i32_0 = arith.constant 0 : i32
    %c0_i32_1 = arith.constant 0 : i32
    return %arg0, %c0_i32, %c0_i32_0 : i32, i32, i32
  }
}

</mosaic_0001>

<llo_original>
// kernel: tpu_custom_call.1
$region0: #{tpu_custom_call.1}
  #allocation0 [shape = 'u32[]', space=smem, size = 0x4, offset = 0x4, fixed_abs, tag = 'smem constant byte address 0x4 - core index']
  #allocation1 [shape = 'u32[72,128]{1,0:T(1,128)}', space=vmem, size = 0x9000, scoped, tag = 'internal scratch']
  %s0 = inlined_call_operand.hbm [shape: f32[16,8,16], index: 0, kind: input, shape index: {}]
  %s1 = inlined_call_operand.hbm [shape: f32[16,8,16], index: 1, kind: input, shape index: {}]
  %s2 = inlined_call_operand.hbm [shape: f32[16,16], index: 2, kind: input, shape index: {}]
  %s3 = inlined_call_operand.hbm [shape: bf16[16,16,16], index: 3, kind: input, shape index: {}]
  %s4 = inlined_call_operand.hbm [shape: f32[16,8,16], index: 4, kind: output, shape index: {}]
  %s5 = sld [smem:[#allocation0]]
  $region42: #{tpu_custom_call.1} parent=0
    _
  %s7 = ssub.s32 1, %s5
  %s8 = scalar_select 0, %s7, %s5
  $region1: #{tpu_custom_call.1} parent=0
    #allocation2 [shape = 'u8[65536]{0}', space=vmem, size = 0x10000, scoped, tag = 'input window, operand 0, single buffered']
    #allocation3 [shape = 's32[1]{0}', space=sflag, size = 0x4, scoped, tag = 'scoped memory for tpu_custom_call.1']
    #allocation4 [shape = 's32[1]{0}', space=sflag, size = 0x4, scoped, tag = 'scoped memory for tpu_custom_call.1']
    #allocation5 [shape = 'u8[65536]{0}', space=vmem, size = 0x10000, scoped, tag = 'input window, operand 1, single buffered']
    #allocation6 [shape = 's32[1]{0}', space=sflag, size = 0x4, scoped, tag = 'scoped memory for tpu_custom_call.1']
    #allocation7 [shape = 'u8[8192]{0}', space=vmem, size = 0x2000, scoped, tag = 'input window, operand 2, single buffered']
    #allocation8 [shape = 'u8[65536]{0}', space=vmem, size = 0x10000, scoped, tag = 'input window, operand 3, single buffered']
    #allocation9 [shape = 's32[1]{0}', space=sflag, size = 0x4, scoped, tag = 'scoped memory for tpu_custom_call.1']
    #allocation10 [shape = 'u8[65536]{0}', space=vmem, size = 0x10000, scoped, tag = 'output window, operand 0, single buffered']
    %9 = vsyncpa [#allocation3], 0
    %10 = vsyncpa [#allocation6], 0
    %11 = vsyncpa [#allocation9], 0
    %12 = vsyncpa [#allocation4], 0
    // Predicated region
    $region2: #{tpu_custom_call.1} parent=1 // pred_check
      _
    $region3: #{tpu_custom_call.1} parent=1 // pred_check_branch
      %14 = sbr.rel (0) target = $region5
    $region4: #{tpu_custom_call.1} parent=1 // pred_region
      %16 = vsyncadd [#allocation3], 0
      %s17 = sshll.u32 %s0, 4
      %s18 = int_to_ptr.hbm [resolvable:$true] %s17
      %s19 = sshll.u32 [#allocation2], 4
      %s20 = int_to_ptr.vmem [resolvable:$true] %s19
      %25 = dma.hbm_to_vmem [thread:$0]  %s18, 2048, %s20, [#allocation3], 128, 128, 8
    $region5: #{tpu_custom_call.1} parent=1 // pred_fallthru
      _
    // Predicated region
    $region6: #{tpu_custom_call.1} parent=1 // pred_check
      _
    $region7: #{tpu_custom_call.1} parent=1 // pred_check_branch
      %27 = sbr.rel (0) target = $region9
    $region8: #{tpu_custom_call.1} parent=1 // pred_region
      %29 = vsyncadd [#allocation6], 0
      %s30 = sshll.u32 %s1, 4
      %s31 = int_to_ptr.hbm [resolvable:$true] %s30
      %s32 = sshll.u32 [#allocation5], 4
      %s33 = int_to_ptr.vmem [resolvable:$true] %s32
      %38 = dma.hbm_to_vmem [thread:$0]  %s31, 2048, %s33, [#allocation6], 128, 128, 8
    $region9: #{tpu_custom_call.1} parent=1 // pred_fallthru
      _
    // Predicated region
    $region10: #{tpu_custom_call.1} parent=1 // pred_check
      _
    $region11: #{tpu_custom_call.1} parent=1 // pred_check_branch
      %40 = sbr.rel (0) target = $region13
    $region12: #{tpu_custom_call.1} parent=1 // pred_region
      %42 = vsyncadd [#allocation6], 0
      %s43 = sshll.u32 %s2, 4
      %s44 = int_to_ptr.hbm [resolvable:$true] %s43
      %s45 = sshll.u32 [#allocation7], 4
      %s46 = int_to_ptr.vmem [resolvable:$true] %s45
      %51 = dma.hbm_to_vmem [thread:$0]  %s44, 256, %s46, [#allocation6], 128, 128, 8
    $region13: #{tpu_custom_call.1} parent=1 // pred_fallthru
      _
    // Predicated region
    $region14: #{tpu_custom_call.1} parent=1 // pred_check
      _
    $region15: #{tpu_custom_call.1} parent=1 // pred_check_branch
      %53 = sbr.rel (0) target = $region17
    $region16: #{tpu_custom_call.1} parent=1 // pred_region
      %55 = vsyncadd [#allocation9], 0
      %s56 = sshll.u32 %s3, 4
      %s57 = int_to_ptr.hbm [resolvable:$true] %s56
      %s58 = sshll.u32 [#allocation8], 4
      %s59 = int_to_ptr.vmem [resolvable:$true] %s58
      %64 = dma.hbm_to_vmem [thread:$0]  %s57, 2048, %s59, [#allocation9], 64, 64, 4
    $region17: #{tpu_custom_call.1} parent=1 // pred_fallthru
      _
    // Predicated region
    $region18: #{tpu_custom_call.1} parent=1 // pred_check
      _
    $region19: #{tpu_custom_call.1} parent=1 // pred_check_branch
      %66 = sbr.rel (0) target = $region21
    $region20: #{tpu_custom_call.1} parent=1 // pred_region
      %68 = dma.done [#allocation3], 2048
    $region21: #{tpu_custom_call.1} parent=1 // pred_fallthru
      _
    // Predicated region
    $region22: #{tpu_custom_call.1} parent=1 // pred_check
      _
    $region23: #{tpu_custom_call.1} parent=1 // pred_check_branch
      %70 = sbr.rel (0) target = $region25
    $region24: #{tpu_custom_call.1} parent=1 // pred_region
      %72 = dma.done [#allocation6], 2048
    $region25: #{tpu_custom_call.1} parent=1 // pred_fallthru
      _
    // Predicated region
    $region26: #{tpu_custom_call.1} parent=1 // pred_check
      _
    $region27: #{tpu_custom_call.1} parent=1 // pred_check_branch
      %74 = sbr.rel (0) target = $region29
    $region28: #{tpu_custom_call.1} parent=1 // pred_region
      %76 = dma.done [#allocation6], 256
    $region29: #{tpu_custom_call.1} parent=1 // pred_fallthru
      _
    // Predicated region
    $region30: #{tpu_custom_call.1} parent=1 // pred_check
      _
    $region31: #{tpu_custom_call.1} parent=1 // pred_check_branch
      %78 = sbr.rel (0) target = $region33
    $region32: #{tpu_custom_call.1} parent=1 // pred_region
      %80 = dma.done [#allocation9], 2048
    $region33: #{tpu_custom_call.1} parent=1 // pred_fallthru
      _
    %v82 = vld [vmem:[#allocation7] sm:$0xff]
    %v83 = vld [vmem:[#allocation7 + $0x8] sm:$0xff]
    %v86 = vrot.slane %v82, 1
    %v87 = vrot.slane %v82, 2
    %v88 = vrot.slane %v82, 3
    %v89 = vrot.slane %v82, 4
    %v90 = vrot.slane %v82, 5
    %v91 = vrot.slane %v82, 6
    %v92 = vrot.slane %v82, 7
    %v93 = vrot.slane %v83, 1
    %v94 = vrot.slane %v83, 2
    %v95 = vrot.slane %v83, 3
    %v96 = vrot.slane %v83, 4
    %v97 = vrot.slane %v83, 5
    %v98 = vrot.slane %v83, 6
    %v99 = vrot.slane %v83, 7
    %v114 = vld [vmem:[#allocation2] sm:$0xff]
    %v115 = vld [vmem:[#allocation2 + $0x8] sm:$0xff]
    %v116 = vld [vmem:[#allocation2 + $0x10] sm:$0xff]
    %v117 = vld [vmem:[#allocation2 + $0x18] sm:$0xff]
    %v118 = vld [vmem:[#allocation2 + $0x20] sm:$0xff]
    %v119 = vld [vmem:[#allocation2 + $0x28] sm:$0xff]
    %v120 = vld [vmem:[#allocation2 + $0x30] sm:$0xff]
    %v121 = vld [vmem:[#allocation2 + $0x38] sm:$0xff]
    %v122 = vld [vmem:[#allocation2 + $0x40] sm:$0xff]
    %v123 = vld [vmem:[#allocation2 + $0x48] sm:$0xff]
    %v124 = vld [vmem:[#allocation2 + $0x50] sm:$0xff]
    %v125 = vld [vmem:[#allocation2 + $0x58] sm:$0xff]
    %v126 = vld [vmem:[#allocation2 + $0x60] sm:$0xff]
    %v127 = vld [vmem:[#allocation2 + $0x68] sm:$0xff]
    %v128 = vld [vmem:[#allocation2 + $0x70] sm:$0xff]
    %v129 = vld [vmem:[#allocation2 + $0x78] sm:$0xff]
    %v130 = vperm.slane %v82, 0
    %v131 = vperm.slane %v86, 0
    %v132 = vperm.slane %v87, 0
    %v133 = vperm.slane %v88, 0
    %v134 = vperm.slane %v89, 0
    %v135 = vperm.slane %v90, 0
    %v136 = vperm.slane %v91, 0
    %v137 = vperm.slane %v92, 0
    %v138 = vperm.slane %v83, 0
    %v139 = vperm.slane %v93, 0
    %v140 = vperm.slane %v94, 0
    %v141 = vperm.slane %v95, 0
    %v142 = vperm.slane %v96, 0
    %v143 = vperm.slane %v97, 0
    %v144 = vperm.slane %v98, 0
    %v145 = vperm.slane %v99, 0
    %v162 = vmul.f32 %v114, %v130
    %v163 = vmul.f32 %v115, %v131
    %v164 = vmul.f32 %v116, %v132
    %v165 = vmul.f32 %v117, %v133
    %v166 = vmul.f32 %v118, %v134
    %v167 = vmul.f32 %v119, %v135
    %v168 = vmul.f32 %v120, %v136
    %v169 = vmul.f32 %v121, %v137
    %v170 = vmul.f32 %v122, %v138
    %v171 = vmul.f32 %v123, %v139
    %v172 = vmul.f32 %v124, %v140
    %v173 = vmul.f32 %v125, %v141
    %v174 = vmul.f32 %v126, %v142
    %v175 = vmul.f32 %v127, %v143
    %v176 = vmul.f32 %v128, %v144
    %v177 = vmul.f32 %v129, %v145
    %v178 = vld [vmem:[#allocation5] sm:$0xff]
    %v179 = vld [vmem:[#allocation5 + $0x8] sm:$0xff]
    %v180 = vld [vmem:[#allocation5 + $0x10] sm:$0xff]
    %v181 = vld [vmem:[#allocation5 + $0x18] sm:$0xff]
    %v182 = vld [vmem:[#allocation5 + $0x20] sm:$0xff]
    %v183 = vld [vmem:[#allocation5 + $0x28] sm:$0xff]
    %v184 = vld [vmem:[#allocation5 + $0x30] sm:$0xff]
    %v185 = vld [vmem:[#allocation5 + $0x38] sm:$0xff]
    %v186 = vld [vmem:[#allocation5 + $0x40] sm:$0xff]
    %v187 = vld [vmem:[#allocation5 + $0x48] sm:$0xff]
    %v188 = vld [vmem:[#allocation5 + $0x50] sm:$0xff]
    %v189 = vld [vmem:[#allocation5 + $0x58] sm:$0xff]
    %v190 = vld [vmem:[#allocation5 + $0x60] sm:$0xff]
    %v191 = vld [vmem:[#allocation5 + $0x68] sm:$0xff]
    %v192 = vld [vmem:[#allocation5 + $0x70] sm:$0xff]
    %v193 = vld [vmem:[#allocation5 + $0x78] sm:$0xff]
    %v194 = vsub.f32 1.0, %v82
    %v195 = vsub.f32 1.0, %v86
    %v196 = vsub.f32 1.0, %v87
    %v197 = vsub.f32 1.0, %v88
    %v198 = vsub.f32 1.0, %v89
    %v199 = vsub.f32 1.0, %v90
    %v200 = vsub.f32 1.0, %v91
    %v201 = vsub.f32 1.0, %v92
    %v202 = vsub.f32 1.0, %v83
    %v203 = vsub.f32 1.0, %v93
    %v204 = vsub.f32 1.0, %v94
    %v205 = vsub.f32 1.0, %v95
    %v206 = vsub.f32 1.0, %v96
    %v207 = vsub.f32 1.0, %v97
    %v208 = vsub.f32 1.0, %v98
    %v209 = vsub.f32 1.0, %v99
    %v226 = vperm.slane %v194, 0
    %v227 = vperm.slane %v195, 0
    %v228 = vperm.slane %v196, 0
    %v229 = vperm.slane %v197, 0
    %v230 = vperm.slane %v198, 0
    %v231 = vperm.slane %v199, 0
    %v232 = vperm.slane %v200, 0
    %v233 = vperm.slane %v201, 0
    %v234 = vperm.slane %v202, 0
    %v235 = vperm.slane %v203, 0
    %v236 = vperm.slane %v204, 0
    %v237 = vperm.slane %v205, 0
    %v238 = vperm.slane %v206, 0
    %v239 = vperm.slane %v207, 0
    %v240 = vperm.slane %v208, 0
    %v241 = vperm.slane %v209, 0
    %v258 = vmul.f32 %v178, %v226
    %v259 = vmul.f32 %v179, %v227
    %v260 = vmul.f32 %v180, %v228
    %v261 = vmul.f32 %v181, %v229
    %v262 = vmul.f32 %v182, %v230
    %v263 = vmul.f32 %v183, %v231
    %v264 = vmul.f32 %v184, %v232
    %v265 = vmul.f32 %v185, %v233
    %v266 = vmul.f32 %v186, %v234
    %v267 = vmul.f32 %v187, %v235
    %v268 = vmul.f32 %v188, %v236
    %v269 = vmul.f32 %v189, %v237
    %v270 = vmul.f32 %v190, %v238
    %v271 = vmul.f32 %v191, %v239
    %v272 = vmul.f32 %v192, %v240
    %v273 = vmul.f32 %v193, %v241
    %v274 = vadd.f32 %v162, %v258
    %v275 = vadd.f32 %v163, %v259
    %v276 = vadd.f32 %v164, %v260
    %v277 = vadd.f32 %v165, %v261
    %v278 = vadd.f32 %v166, %v262
    %v279 = vadd.f32 %v167, %v263
    %v280 = vadd.f32 %v168, %v264
    %v281 = vadd.f32 %v169, %v265
    %v282 = vadd.f32 %v170, %v266
    %v283 = vadd.f32 %v171, %v267
    %v284 = vadd.f32 %v172, %v268
    %v285 = vadd.f32 %v173, %v269
    %v286 = vadd.f32 %v174, %v270
    %v287 = vadd.f32 %v175, %v271
    %v288 = vadd.f32 %v176, %v272
    %v289 = vadd.f32 %v177, %v273
    %v290 = vpack.c.bf16 %v274, %v274
    %v291 = vpack.c.bf16 %v275, %v275
    %v292 = vpack.c.bf16 %v276, %v276
    %v293 = vpack.c.bf16 %v277, %v277
    %v294 = vpack.c.bf16 %v278, %v278
    %v295 = vpack.c.bf16 %v279, %v279
    %v296 = vpack.c.bf16 %v280, %v280
    %v297 = vpack.c.bf16 %v281, %v281
    %v298 = vpack.c.bf16 %v282, %v282
    %v299 = vpack.c.bf16 %v283, %v283
    %v300 = vpack.c.bf16 %v284, %v284
    %v301 = vpack.c.bf16 %v285, %v285
    %v302 = vpack.c.bf16 %v286, %v286
    %v303 = vpack.c.bf16 %v287, %v287
    %v304 = vpack.c.bf16 %v288, %v288
    %v305 = vpack.c.bf16 %v289, %v289
    %v306 = vld [vmem:[#allocation8] sm:$0xf]
    %v307 = vld [vmem:[#allocation8 + $0x4] sm:$0xf]
    %v308 = vld [vmem:[#allocation8 + $0x8] sm:$0xf]
    %v309 = vld [vmem:[#allocation8 + $0xc] sm:$0xf]
    %v310 = vld [vmem:[#allocation8 + $0x10] sm:$0xf]
    %v311 = vld [vmem:[#allocation8 + $0x14] sm:$0xf]
    %v312 = vld [vmem:[#allocation8 + $0x18] sm:$0xf]
    %v313 = vld [vmem:[#allocation8 + $0x1c] sm:$0xf]
    %v314 = vld [vmem:[#allocation8 + $0x20] sm:$0xf]
    %v315 = vld [vmem:[#allocation8 + $0x24] sm:$0xf]
    %v316 = vld [vmem:[#allocation8 + $0x28] sm:$0xf]
    %v317 = vld [vmem:[#allocation8 + $0x2c] sm:$0xf]
    %v318 = vld [vmem:[#allocation8 + $0x30] sm:$0xf]
    %v319 = vld [vmem:[#allocation8 + $0x34] sm:$0xf]
    %v320 = vld [vmem:[#allocation8 + $0x38] sm:$0xf]
    %v321 = vld [vmem:[#allocation8 + $0x3c] sm:$0xf]
    %v322 = vld [vmem:[#allocation8 + $0x40] sm:$0xf]
    %v323 = vld [vmem:[#allocation8 + $0x44] sm:$0xf]
    %v324 = vld [vmem:[#allocation8 + $0x48] sm:$0xf]
    %v325 = vld [vmem:[#allocation8 + $0x4c] sm:$0xf]
    %v326 = vld [vmem:[#allocation8 + $0x50] sm:$0xf]
    %v327 = vld [vmem:[#allocation8 + $0x54] sm:$0xf]
    %v328 = vld [vmem:[#allocation8 + $0x58] sm:$0xf]
    %v329 = vld [vmem:[#allocation8 + $0x5c] sm:$0xf]
    %v330 = vld [vmem:[#allocation8 + $0x60] sm:$0xf]
    %v331 = vld [vmem:[#allocation8 + $0x64] sm:$0xf]
    %v332 = vld [vmem:[#allocation8 + $0x68] sm:$0xf]
    %v333 = vld [vmem:[#allocation8 + $0x6c] sm:$0xf]
    %v334 = vld [vmem:[#allocation8 + $0x70] sm:$0xf]
    %v335 = vld [vmem:[#allocation8 + $0x74] sm:$0xf]
    %v336 = vld [vmem:[#allocation8 + $0x78] sm:$0xf]
    %v337 = vld [vmem:[#allocation8 + $0x7c] sm:$0xf]
    %v340 = vunpack.c.l.b16 %v306
    %v341 = vunpack.c.l.b16 %v307
    %v342 = vpack.c.b16 %v341, %v340
    %vm344 = vcmask 130048
    %v346 = vsel %vm344, %v290, 0
    %348 = vmatpush.bf16.msra.mxu0 0
    %349 = vmatpush.bf16.msra.mxu0 0
    %350 = vmatpush.bf16.msra.mxu0 0
    %351 = vmatpush.bf16.msra.mxu0 0
    %352 = vmatpush.bf16.msra.mxu0 0
    %353 = vmatpush.bf16.msra.mxu0 0
    %354 = vmatpush.bf16.msra.mxu0 0
    %355 = vmatpush.bf16.msra.mxu0 %v342
    %356 = vmatmul.bf16.gmra.mxu0 %v346
    %v357 = vpop.f32.mrf.mxu0
    %v358 = vadd.f32 0.0, %v357
    %v359 = vpop.f32.mrf.mxu0
    %360 = vdwg.mxu0
    %v363 = vunpack.c.l.b16 %v308
    %v364 = vunpack.c.l.b16 %v309
    %v365 = vpack.c.b16 %v364, %v363
    %v368 = vsel %vm344, %v291, 0
    %370 = vmatpush.bf16.msra.mxu0 0
    %371 = vmatpush.bf16.msra.mxu0 0
    %372 = vmatpush.bf16.msra.mxu0 0
    %373 = vmatpush.bf16.msra.mxu0 0
    %374 = vmatpush.bf16.msra.mxu0 0
    %375 = vmatpush.bf16.msra.mxu0 0
    %376 = vmatpush.bf16.msra.mxu0 0
    %377 = vmatpush.bf16.msra.mxu0 %v365
    %378 = vmatmul.bf16.gmra.mxu0 %v368
    %v379 = vpop.f32.mrf.mxu0
    %v380 = vadd.f32 0.0, %v379
    %v381 = vpop.f32.mrf.mxu0
    %382 = vdwg.mxu0
    %v385 = vunpack.c.l.b16 %v310
    %v386 = vunpack.c.l.b16 %v311
    %v387 = vpack.c.b16 %v386, %v385
    %v390 = vsel %vm344, %v292, 0
    %392 = vmatpush.bf16.msra.mxu0 0
    %393 = vmatpush.bf16.msra.mxu0 0
    %394 = vmatpush.bf16.msra.mxu0 0
    %395 = vmatpush.bf16.msra.mxu0 0
    %396 = vmatpush.bf16.msra.mxu0 0
    %397 = vmatpush.bf16.msra.mxu0 0
    %398 = vmatpush.bf16.msra.mxu0 0
    %399 = vmatpush.bf16.msra.mxu0 %v387
    %400 = vmatmul.bf16.gmra.mxu0 %v390
    %v401 = vpop.f32.mrf.mxu0
    %v402 = vadd.f32 0.0, %v401
    %v403 = vpop.f32.mrf.mxu0
    %404 = vdwg.mxu0
    %v407 = vunpack.c.l.b16 %v312
    %v408 = vunpack.c.l.b16 %v313
    %v409 = vpack.c.b16 %v408, %v407
    %v412 = vsel %vm344, %v293, 0
    %414 = vmatpush.bf16.msra.mxu0 0
    %415 = vmatpush.bf16.msra.mxu0 0
    %416 = vmatpush.bf16.msra.mxu0 0
    %417 = vmatpush.bf16.msra.mxu0 0
    %418 = vmatpush.bf16.msra.mxu0 0
    %419 = vmatpush.bf16.msra.mxu0 0
    %420 = vmatpush.bf16.msra.mxu0 0
    %421 = vmatpush.bf16.msra.mxu0 %v409
    %422 = vmatmul.bf16.gmra.mxu0 %v412
    %v423 = vpop.f32.mrf.mxu0
    %v424 = vadd.f32 0.0, %v423
    %v425 = vpop.f32.mrf.mxu0
    %426 = vdwg.mxu0
    %v429 = vunpack.c.l.b16 %v314
    %v430 = vunpack.c.l.b16 %v315
    %v431 = vpack.c.b16 %v430, %v429
    %v434 = vsel %vm344, %v294, 0
    %436 = vmatpush.bf16.msra.mxu0 0
    %437 = vmatpush.bf16.msra.mxu0 0
    %438 = vmatpush.bf16.msra.mxu0 0
    %439 = vmatpush.bf16.msra.mxu0 0
    %440 = vmatpush.bf16.msra.mxu0 0
    %441 = vmatpush.bf16.msra.mxu0 0
    %442 = vmatpush.bf16.msra.mxu0 0
    %443 = vmatpush.bf16.msra.mxu0 %v431
    %444 = vmatmul.bf16.gmra.mxu0 %v434
    %v445 = vpop.f32.mrf.mxu0
    %v446 = vadd.f32 0.0, %v445
    %v447 = vpop.f32.mrf.mxu0
    %448 = vdwg.mxu0
    %v451 = vunpack.c.l.b16 %v316
    %v452 = vunpack.c.l.b16 %v317
    %v453 = vpack.c.b16 %v452, %v451
    %v456 = vsel %vm344, %v295, 0
    %458 = vmatpush.bf16.msra.mxu0 0
    %459 = vmatpush.bf16.msra.mxu0 0
    %460 = vmatpush.bf16.msra.mxu0 0
    %461 = vmatpush.bf16.msra.mxu0 0
    %462 = vmatpush.bf16.msra.mxu0 0
    %463 = vmatpush.bf16.msra.mxu0 0
    %464 = vmatpush.bf16.msra.mxu0 0
    %465 = vmatpush.bf16.msra.mxu0 %v453
    %466 = vmatmul.bf16.gmra.mxu0 %v456
    %v467 = vpop.f32.mrf.mxu0
    %v468 = vadd.f32 0.0, %v467
    %v469 = vpop.f32.mrf.mxu0
    %470 = vdwg.mxu0
    %v473 = vunpack.c.l.b16 %v318
    %v474 = vunpack.c.l.b16 %v319
    %v475 = vpack.c.b16 %v474, %v473
    %v478 = vsel %vm344, %v296, 0
    %480 = vmatpush.bf16.msra.mxu0 0
    %481 = vmatpush.bf16.msra.mxu0 0
    %482 = vmatpush.bf16.msra.mxu0 0
    %483 = vmatpush.bf16.msra.mxu0 0
    %484 = vmatpush.bf16.msra.mxu0 0
    %485 = vmatpush.bf16.msra.mxu0 0
    %486 = vmatpush.bf16.msra.mxu0 0
    %487 = vmatpush.bf16.msra.mxu0 %v475
    %488 = vmatmul.bf16.gmra.mxu0 %v478
    %v489 = vpop.f32.mrf.mxu0
    %v490 = vadd.f32 0.0, %v489
    %v491 = vpop.f32.mrf.mxu0
    %492 = vdwg.mxu0
    %v495 = vunpack.c.l.b16 %v320
    %v496 = vunpack.c.l.b16 %v321
    %v497 = vpack.c.b16 %v496, %v495
    %v500 = vsel %vm344, %v297, 0
    %502 = vmatpush.bf16.msra.mxu0 0
    %503 = vmatpush.bf16.msra.mxu0 0
    %504 = vmatpush.bf16.msra.mxu0 0
    %505 = vmatpush.bf16.msra.mxu0 0
    %506 = vmatpush.bf16.msra.mxu0 0
    %507 = vmatpush.bf16.msra.mxu0 0
    %508 = vmatpush.bf16.msra.mxu0 0
    %509 = vmatpush.bf16.msra.mxu0 %v497
    %510 = vmatmul.bf16.gmra.mxu0 %v500
    %v511 = vpop.f32.mrf.mxu0
    %v512 = vadd.f32 0.0, %v511
    %v513 = vpop.f32.mrf.mxu0
    %514 = vdwg.mxu0
    %v517 = vunpack.c.l.b16 %v322
    %v518 = vunpack.c.l.b16 %v323
    %v519 = vpack.c.b16 %v518, %v517
    %v522 = vsel %vm344, %v298, 0
    %524 = vmatpush.bf16.msra.mxu0 0
    %525 = vmatpush.bf16.msra.mxu0 0
    %526 = vmatpush.bf16.msra.mxu0 0
    %527 = vmatpush.bf16.msra.mxu0 0
    %528 = vmatpush.bf16.msra.mxu0 0
    %529 = vmatpush.bf16.msra.mxu0 0
    %530 = vmatpush.bf16.msra.mxu0 0
    %531 = vmatpush.bf16.msra.mxu0 %v519
    %532 = vmatmul.bf16.gmra.mxu0 %v522
    %v533 = vpop.f32.mrf.mxu0
    %v534 = vadd.f32 0.0, %v533
    %v535 = vpop.f32.mrf.mxu0
    %536 = vdwg.mxu0
    %v539 = vunpack.c.l.b16 %v324
    %v540 = vunpack.c.l.b16 %v325
    %v541 = vpack.c.b16 %v540, %v539
    %v544 = vsel %vm344, %v299, 0
    %546 = vmatpush.bf16.msra.mxu0 0
    %547 = vmatpush.bf16.msra.mxu0 0
    %548 = vmatpush.bf16.msra.mxu0 0
    %549 = vmatpush.bf16.msra.mxu0 0
    %550 = vmatpush.bf16.msra.mxu0 0
    %551 = vmatpush.bf16.msra.mxu0 0
    %552 = vmatpush.bf16.msra.mxu0 0
    %553 = vmatpush.bf16.msra.mxu0 %v541
    %554 = vmatmul.bf16.gmra.mxu0 %v544
    %v555 = vpop.f32.mrf.mxu0
    %v556 = vadd.f32 0.0, %v555
    %v557 = vpop.f32.mrf.mxu0
    %558 = vdwg.mxu0
    %v561 = vunpack.c.l.b16 %v326
    %v562 = vunpack.c.l.b16 %v327
    %v563 = vpack.c.b16 %v562, %v561
    %v566 = vsel %vm344, %v300, 0
    %568 = vmatpush.bf16.msra.mxu0 0
    %569 = vmatpush.bf16.msra.mxu0 0
    %570 = vmatpush.bf16.msra.mxu0 0
    %571 = vmatpush.bf16.msra.mxu0 0
    %572 = vmatpush.bf16.msra.mxu0 0
    %573 = vmatpush.bf16.msra.mxu0 0
    %574 = vmatpush.bf16.msra.mxu0 0
    %575 = vmatpush.bf16.msra.mxu0 %v563
    %576 = vmatmul.bf16.gmra.mxu0 %v566
    %v577 = vpop.f32.mrf.mxu0
    %v578 = vadd.f32 0.0, %v577
    %v579 = vpop.f32.mrf.mxu0
    %580 = vdwg.mxu0
    %v583 = vunpack.c.l.b16 %v328
    %v584 = vunpack.c.l.b16 %v329
    %v585 = vpack.c.b16 %v584, %v583
    %v588 = vsel %vm344, %v301, 0
    %590 = vmatpush.bf16.msra.mxu0 0
    %591 = vmatpush.bf16.msra.mxu0 0
    %592 = vmatpush.bf16.msra.mxu0 0
    %593 = vmatpush.bf16.msra.mxu0 0
    %594 = vmatpush.bf16.msra.mxu0 0
    %595 = vmatpush.bf16.msra.mxu0 0
    %596 = vmatpush.bf16.msra.mxu0 0
    %597 = vmatpush.bf16.msra.mxu0 %v585
    %598 = vmatmul.bf16.gmra.mxu0 %v588
    %v599 = vpop.f32.mrf.mxu0
    %v600 = vadd.f32 0.0, %v599
    %v601 = vpop.f32.mrf.mxu0
    %602 = vdwg.mxu0
    %v605 = vunpack.c.l.b16 %v330
    %v606 = vunpack.c.l.b16 %v331
    %v607 = vpack.c.b16 %v606, %v605
    %v610 = vsel %vm344, %v302, 0
    %612 = vmatpush.bf16.msra.mxu0 0
    %613 = vmatpush.bf16.msra.mxu0 0
    %614 = vmatpush.bf16.msra.mxu0 0
    %615 = vmatpush.bf16.msra.mxu0 0
    %616 = vmatpush.bf16.msra.mxu0 0
    %617 = vmatpush.bf16.msra.mxu0 0
    %618 = vmatpush.bf16.msra.mxu0 0
    %619 = vmatpush.bf16.msra.mxu0 %v607
    %620 = vmatmul.bf16.gmra.mxu0 %v610
    %v621 = vpop.f32.mrf.mxu0
    %v622 = vadd.f32 0.0, %v621
    %v623 = vpop.f32.mrf.mxu0
    %624 = vdwg.mxu0
    %v627 = vunpack.c.l.b16 %v332
    %v628 = vunpack.c.l.b16 %v333
    %v629 = vpack.c.b16 %v628, %v627
    %v632 = vsel %vm344, %v303, 0
    %634 = vmatpush.bf16.msra.mxu0 0
    %635 = vmatpush.bf16.msra.mxu0 0
    %636 = vmatpush.bf16.msra.mxu0 0
    %637 = vmatpush.bf16.msra.mxu0 0
    %638 = vmatpush.bf16.msra.mxu0 0
    %639 = vmatpush.bf16.msra.mxu0 0
    %640 = vmatpush.bf16.msra.mxu0 0
    %641 = vmatpush.bf16.msra.mxu0 %v629
    %642 = vmatmul.bf16.gmra.mxu0 %v632
    %v643 = vpop.f32.mrf.mxu0
    %v644 = vadd.f32 0.0, %v643
    %v645 = vpop.f32.mrf.mxu0
    %646 = vdwg.mxu0
    %v649 = vunpack.c.l.b16 %v334
    %v650 = vunpack.c.l.b16 %v335
    %v651 = vpack.c.b16 %v650, %v649
    %v654 = vsel %vm344, %v304, 0
    %656 = vmatpush.bf16.msra.mxu0 0
    %657 = vmatpush.bf16.msra.mxu0 0
    %658 = vmatpush.bf16.msra.mxu0 0
    %659 = vmatpush.bf16.msra.mxu0 0
    %660 = vmatpush.bf16.msra.mxu0 0
    %661 = vmatpush.bf16.msra.mxu0 0
    %662 = vmatpush.bf16.msra.mxu0 0
    %663 = vmatpush.bf16.msra.mxu0 %v651
    %664 = vmatmul.bf16.gmra.mxu0 %v654
    %v665 = vpop.f32.mrf.mxu0
    %v666 = vadd.f32 0.0, %v665
    %v667 = vpop.f32.mrf.mxu0
    %668 = vdwg.mxu0
    %v671 = vunpack.c.l.b16 %v336
    %v672 = vunpack.c.l.b16 %v337
    %v673 = vpack.c.b16 %v672, %v671
    %v676 = vsel %vm344, %v305, 0
    %678 = vmatpush.bf16.msra.mxu0 0
    %679 = vmatpush.bf16.msra.mxu0 0
    %680 = vmatpush.bf16.msra.mxu0 0
    %681 = vmatpush.bf16.msra.mxu0 0
    %682 = vmatpush.bf16.msra.mxu0 0
    %683 = vmatpush.bf16.msra.mxu0 0
    %684 = vmatpush.bf16.msra.mxu0 0
    %685 = vmatpush.bf16.msra.mxu0 %v673
    %686 = vmatmul.bf16.gmra.mxu0 %v676
    %v687 = vpop.f32.mrf.mxu0
    %v688 = vadd.f32 0.0, %v687
    %v689 = vpop.f32.mrf.mxu0
    %690 = vdwg.mxu0
    %691 = vst.msk [vmem:[#allocation10] sm:$0xff] %vm344, %v358
    %692 = vst.msk [vmem:[#allocation10 + $0x8] sm:$0xff] %vm344, %v380
    %693 = vst.msk [vmem:[#allocation10 + $0x10] sm:$0xff] %vm344, %v402
    %694 = vst.msk [vmem:[#allocation10 + $0x18] sm:$0xff] %vm344, %v424
    %695 = vst.msk [vmem:[#allocation10 + $0x20] sm:$0xff] %vm344, %v446
    %696 = vst.msk [vmem:[#allocation10 + $0x28] sm:$0xff] %vm344, %v468
    %697 = vst.msk [vmem:[#allocation10 + $0x30] sm:$0xff] %vm344, %v490
    %698 = vst.msk [vmem:[#allocation10 + $0x38] sm:$0xff] %vm344, %v512
    %699 = vst.msk [vmem:[#allocation10 + $0x40] sm:$0xff] %vm344, %v534
    %700 = vst.msk [vmem:[#allocation10 + $0x48] sm:$0xff] %vm344, %v556
    %701 = vst.msk [vmem:[#allocation10 + $0x50] sm:$0xff] %vm344, %v578
    %702 = vst.msk [vmem:[#allocation10 + $0x58] sm:$0xff] %vm344, %v600
    %703 = vst.msk [vmem:[#allocation10 + $0x60] sm:$0xff] %vm344, %v622
    %704 = vst.msk [vmem:[#allocation10 + $0x68] sm:$0xff] %vm344, %v644
    %705 = vst.msk [vmem:[#allocation10 + $0x70] sm:$0xff] %vm344, %v666
    %706 = vst.msk [vmem:[#allocation10 + $0x78] sm:$0xff] %vm344, %v688
    // Predicated region
    $region34: #{tpu_custom_call.1} parent=1 // pred_check
      _
    $region35: #{tpu_custom_call.1} parent=1 // pred_check_branch
      %708 = sbr.rel (0) target = $region37
    $region36: #{tpu_custom_call.1} parent=1 // pred_region
      %710 = vsyncadd [#allocation4], 0
      %s711 = sshll.u32 [#allocation10], 4
      %s712 = int_to_ptr.vmem [resolvable:$true] %s711
      %s713 = sshll.u32 %s4, 4
      %s714 = int_to_ptr.hbm [resolvable:$true] %s713
      %719 = dma.vmem_to_hbm [thread:$0]  %s712, 2048, %s714, [#allocation4], 128, 128, 8
    $region37: #{tpu_custom_call.1} parent=1 // pred_fallthru
      _
    // Predicated region
    $region38: #{tpu_custom_call.1} parent=1 // pred_check
      _
    $region39: #{tpu_custom_call.1} parent=1 // pred_check_branch
      %721 = sbr.rel (0) target = $region41
    $region40: #{tpu_custom_call.1} parent=1 // pred_region
      %723 = dma.done [#allocation4], 2048
    $region41: #{tpu_custom_call.1} parent=1 // pred_fallthru
      _
    %724 = vsyncpa [#allocation3], 1
    %725 = vsyncpa [#allocation6], 1
    %726 = vsyncpa [#allocation9], 1
    %727 = vsyncpa [#allocation4], 1

</llo_original>
